<compile_context>
chip_gen: v5e
topology: v5e:2x2
jax: 0.10.0
libtpu: 0.0.40
codegen_flags: <defaults>
</compile_context>

<pallas_src>
import functools

import jax
import jax.numpy as jnp
import numpy as np
from jax.experimental import pallas as pl
from jax.experimental.pallas import tpu as pltpu


# ---------------------------------------------------------------------------
# Mask creation (Encoder.create_mask). PyTorch `.expand` is a view; materializing
# (B,N,T,T)/(B,T,N,N) in HBM would be pure redundant broadcast writeback, so this is
# a plain-JAX broadcast helper meant to be consumed/fused by the attention kernels.
# ---------------------------------------------------------------------------
def create_mask(mask_o):
    B, N, T = mask_o.shape
    t_mask = jnp.broadcast_to(mask_o[:, :, None, :], (B, N, T, T))
    s_mask = jnp.broadcast_to(
        jnp.transpose(mask_o, (0, 2, 1))[:, :, None, :], (B, T, N, N)
    )
    return t_mask, s_mask


# ---------------------------------------------------------------------------
# LayerNorm kernels (the Encoder's final `self.norm`)
# ---------------------------------------------------------------------------
def _ln_packed_kernel(x_ref, w_ref, b_ref, avg_ref, o_ref, *, eps):
    """Lane-packed LN: each 128-lane physical row holds `pack` logical D-rows.

    Per-segment statistics via MXU matmuls against a (W, W) block-diagonal averaging
    matrix (A[i, j] = 1/D iff i and j are in the same D-segment). The matmul result is
    already broadcast across each segment, so no cross-lane XLU reductions or
    per-segment select loops are needed; the otherwise-idle MXU does the work and the
    kernel stays HBM-bandwidth-bound. Two-pass variance avoids cancellation.
    """
    x = x_ref[...].astype(jnp.float32)                    # (TR, W)
    a = avg_ref[...]                                      # (W, W) resident
    mean = jnp.dot(x, a, preferred_element_type=jnp.float32)
    xc = x - mean
    var = jnp.dot(xc * xc, a, preferred_element_type=jnp.float32)  # biased (PyTorch LN)
    y = xc * jax.lax.rsqrt(var + eps) * w_ref[...] + b_ref[...]
    o_ref[...] = y.astype(o_ref.dtype)


def _ln_plain_kernel(x_ref, w_ref, b_ref, o_ref, *, eps):
    """Unpacked LN path (D >= 128 or 128 % D != 0): plain cross-lane reductions."""
    x = x_ref[...].astype(jnp.float32)
    mean = jnp.mean(x, axis=-1, keepdims=True)
    xc = x - mean
    var = jnp.mean(xc * xc, axis=-1, keepdims=True)       # biased var (PyTorch LN)
    y = xc * jax.lax.rsqrt(var + eps) * w_ref[...] + b_ref[...]
    o_ref[...] = y.astype(o_ref.dtype)


def _block_budget():
    """Generation-aware (target_block_bytes, vmem_limit_bytes)."""
    try:
        cap = int(getattr(pltpu.get_tpu_info(), "vmem_capacity_bytes", 0))
    except Exception:
        cap = 0
    if cap and cap <= 64 * 1024 * 1024:
        # v7x-class: 64 MiB physical VMEM per TC -> keep 2x(in+out) blocks <= ~24 MiB.
        return 6 * 1024 * 1024, 48 * 1024 * 1024
    if cap:
        # v5e / v6e: 128 MiB physical VMEM -> larger blocks, higher scoped limit.
        return 8 * 1024 * 1024, 64 * 1024 * 1024
    # Unknown part: conservative values that are safe on every generation.
    return 4 * 1024 * 1024, 48 * 1024 * 1024


def layernorm(x, weight, bias, *, eps=1e-5, target_block_bytes=None,
              max_block_rows=8192, vmem_limit_bytes=None):
    orig_shape = x.shape
    D = int(orig_shape[-1])
    R = int(np.prod(orig_shape[:-1]))

    auto_block, auto_vmem = _block_budget()
    if target_block_bytes is None:
        target_block_bytes = auto_block
    if vmem_limit_bytes is None:
        vmem_limit_bytes = auto_vmem

    # Lane packing: place `pack` logical D-rows in one 128-lane-wide physical row so
    # loads / VPU ops / stores use full vregs (D=32 would otherwise run at 32/128
    # lane density with ~4.5x more expensive masked stores). Packing is kept for ALL
    # shapes with 128 % D == 0; only a <pack-row remainder is ever padded.
    pack = 128 // D if (D < 128 and 128 % D == 0) else 1
    W = pack * D

    x2 = x.reshape(R, D)
    R_eff = R
    if R % pack != 0:
        # TODO(synk): this small (<pack rows) pad still costs an HBM copy; fold the
        # tail into the kernel with a masked store on a 1-D element view instead.
        pad_rows = pack - R % pack
        x2 = jnp.pad(x2, ((0, pad_rows), (0, 0)))
        R_eff = R + pad_rows
    Rp = R_eff // pack
    x2 = x2.reshape(Rp, W)                          # contiguity-preserving (free) reshape
    w2 = jnp.tile(weight.reshape(-1), pack).reshape(1, W)
    b2 = jnp.tile(bias.reshape(-1), pack).reshape(1, W)

    # Largest row tile within the per-block byte budget, rounded down to the dtype's
    # sublane multiple (8 f32 / 16 bf16 / 32 int8), capped, then clamped to Rp.
    itemsize = jnp.dtype(x.dtype).itemsize
    sublane = max(8, 32 // itemsize)
    block_rows = target_block_bytes // (W * itemsize)
    block_rows = max(sublane, (block_rows // sublane) * sublane)
    block_rows = int(min(block_rows, max_block_rows))
    if block_rows >= Rp:
        block_rows = Rp                             # single grid step, full-extent block
    # No wrapper-side jnp.pad for ragged row counts: grid = cdiv and Pallas pads the
    # last block on load / masks it on store (rows are independent, so garbage in the
    # padded region never contaminates valid rows).
    grid = (int(pl.cdiv(Rp, block_rows)),)

    cparams = pltpu.CompilerParams(
        dimension_semantics=("parallel",),          # rows independent -> both TCs on v7x
        vmem_limit_bytes=int(vmem_limit_bytes),
    )

    if pack > 1:
        seg = jnp.arange(W, dtype=jnp.int32) // D
        avg = (seg[:, None] == seg[None, :]).astype(jnp.float32) * (1.0 / D)  # (128,128)
        out = pl.pallas_call(
            functools.partial(_ln_packed_kernel, eps=eps),
            out_shape=jax.ShapeDtypeStruct((Rp, W), x.dtype),
            grid=grid,
            in_specs=[
                pl.BlockSpec((block_rows, W), lambda i: (i, 0)),
                pl.BlockSpec((1, W), lambda i: (0, 0)),   # resident weight
                pl.BlockSpec((1, W), lambda i: (0, 0)),   # resident bias
                pl.BlockSpec((W, W), lambda i: (0, 0)),   # resident averaging matrix
            ],
            out_specs=pl.BlockSpec((block_rows, W), lambda i: (i, 0)),
            compiler_params=cparams,
        )(x2, w2, b2, avg)
    else:
        out = pl.pallas_call(
            functools.partial(_ln_plain_kernel, eps=eps),
            out_shape=jax.ShapeDtypeStruct((Rp, W), x.dtype),
            grid=grid,
            in_specs=[
                pl.BlockSpec((block_rows, W), lambda i: (i, 0)),
                pl.BlockSpec((1, W), lambda i: (0, 0)),
                pl.BlockSpec((1, W), lambda i: (0, 0)),
            ],
            out_specs=pl.BlockSpec((block_rows, W), lambda i: (i, 0)),
            compiler_params=cparams,
        )(x2, w2, b2)

    out = out.reshape(R_eff, D)
    if R_eff != R:
        out = out[:R]
    return out.reshape(orig_shape)


# ---------------------------------------------------------------------------
# Encoder forward (Pallas-backed)
# ---------------------------------------------------------------------------
def encoder_forward(params, x, mask_o, adjm):
    # TODO(synk): the per-layer blocks (`layer(dim=..., drop_path=...)`) are injected
    # and opaque (not defined in the module), so they are treated as identity. When
    # implemented, broadcast mask_o inside their attention kernels (see create_mask)
    # instead of materializing (B,N,T,T)/(B,T,N,N) masks in HBM.
    del mask_o, adjm
    return layernorm(x, params["ln_weight"], params["ln_bias"])


if __name__ == "__main__":
    key = jax.random.PRNGKey(0)
    k1, k2, k3, k4, k5 = jax.random.split(key, 5)

    B, N, T, D = 2, 4, 8, 32

    x = jax.random.normal(k1, (B, N, T, D), dtype=jnp.float32)
    mask_o = (jax.random.uniform(k2, (B, N, T)) > 0.3).astype(jnp.float32)
    adjm = jax.random.normal(k3, (B, N, N), dtype=jnp.float32)

    params = {
        "ln_weight": 1.0 + 0.01 * jax.random.normal(k4, (D,), dtype=jnp.float32),
        "ln_bias": 0.01 * jax.random.normal(k5, (D,), dtype=jnp.float32),
    }

    out = encoder_forward(params, x, mask_o, adjm)
    out = jax.block_until_ready(out)

    # --- correctness check vs plain-JAX reference ---------------------------
    mean = jnp.mean(x, axis=-1, keepdims=True)
    var = jnp.mean((x - mean) ** 2, axis=-1, keepdims=True)
    ln_ref = (x - mean) * jax.lax.rsqrt(var + 1e-5) * params["ln_weight"] + params["ln_bias"]
    assert np.allclose(np.asarray(out), np.asarray(ln_ref), atol=1e-4, rtol=1e-4)

    # mask semantics preserved (broadcast views, to be consumed by attention kernels)
    t_mask, s_mask = jax.block_until_ready(create_mask(mask_o))
    m_np = np.asarray(mask_o)
    t_ref = np.broadcast_to(m_np[:, :, None, :], (B, N, T, T))
    s_ref = np.broadcast_to(np.transpose(m_np, (0, 2, 1))[:, :, None, :], (B, T, N, N))
    assert np.array_equal(np.asarray(t_mask), t_ref)
    assert np.array_equal(np.asarray(s_mask), s_ref)

    print("KERNEL_OK")
</pallas_src>

<mosaic_0001>
module attributes {stable_mosaic.version = 11 : i64} {
  func.func @_ln_packed_kernel(%arg0: i32, %arg1: memref<16x128xf32, #tpu.memory_space<vmem>>, %arg2: memref<1x128xf32, #tpu.memory_space<vmem>>, %arg3: memref<1x128xf32, #tpu.memory_space<vmem>>, %arg4: memref<128x128xf32, #tpu.memory_space<vmem>>, %arg5: memref<16x128xf32, #tpu.memory_space<vmem>>) attributes {dimension_semantics = [#tpu.dimension_semantics<parallel>], iteration_bounds = array<i64: 1>, scalar_prefetch = 0 : i64, scratch_operands = 0 : i64, tpu.core_type = #tpu.core_type<tc>, window_params = [{transform_indices = @transform_0, window_bounds = array<i64: 16, 128>}, {pipeline_mode = #tpu.pipeline_mode<synchronous>, transform_indices = @transform_1, window_bounds = array<i64: 1, 128>}, {pipeline_mode = #tpu.pipeline_mode<synchronous>, transform_indices = @transform_2, window_bounds = array<i64: 1, 128>}, {pipeline_mode = #tpu.pipeline_mode<synchronous>, transform_indices = @transform_3, window_bounds = array<i64: 128, 128>}, {transform_indices = @transform_4, window_bounds = array<i64: 16, 128>}]} {
    %c0 = arith.constant 0 : index
    %c0_0 = arith.constant 0 : index
    %0 = vector.load %arg1[%c0, %c0_0] : memref<16x128xf32, #tpu.memory_space<vmem>>, vector<16x128xf32>
    %c0_1 = arith.constant 0 : index
    %c0_2 = arith.constant 0 : index
    %1 = vector.load %arg4[%c0_1, %c0_2] : memref<128x128xf32, #tpu.memory_space<vmem>>, vector<128x128xf32>
    %cst = arith.constant dense<0.000000e+00> : vector<16x128xf32>
    %2 = tpu.matmul %0, %1, %cst {dimension_numbers = #tpu.dot_dimension_numbers<[1], [0], [0], [1], [0, 0, 1, 1], [], []>} : vector<16x128xf32>, vector<128x128xf32>, vector<16x128xf32> -> vector<16x128xf32>
    %3 = arith.subf %0, %2 : vector<16x128xf32>
    %4 = arith.mulf %3, %3 : vector<16x128xf32>
    %cst_3 = arith.constant dense<0.000000e+00> : vector<16x128xf32>
    %5 = tpu.matmul %4, %1, %cst_3 {dimension_numbers = #tpu.dot_dimension_numbers<[1], [0], [0], [1], [0, 0, 1, 1], [], []>} : vector<16x128xf32>, vector<128x128xf32>, vector<16x128xf32> -> vector<16x128xf32>
    %cst_4 = arith.constant 9.99999974E-6 : f32
    %6 = vector.broadcast %cst_4 : f32 to vector<16x128xf32>
    %7 = arith.addf %5, %6 : vector<16x128xf32>
    %8 = math.rsqrt %7 : vector<16x128xf32>
    %9 = arith.mulf %3, %8 : vector<16x128xf32>
    %c0_5 = arith.constant 0 : index
    %c0_6 = arith.constant 0 : index
    %10 = vector.load %arg2[%c0_5, %c0_6] : memref<1x128xf32, #tpu.memory_space<vmem>>, vector<1x128xf32>
    %11 = vector.broadcast %10 : vector<1x128xf32> to vector<16x128xf32>
    %12 = arith.mulf %9, %11 : vector<16x128xf32>
    %c0_7 = arith.constant 0 : index
    %c0_8 = arith.constant 0 : index
    %13 = vector.load %arg3[%c0_7, %c0_8] : memref<1x128xf32, #tpu.memory_space<vmem>>, vector<1x128xf32>
    %14 = vector.broadcast %13 : vector<1x128xf32> to vector<16x128xf32>
    %15 = arith.addf %12, %14 : vector<16x128xf32>
    %c0_9 = arith.constant 0 : index
    %c0_10 = arith.constant 0 : index
    %16 = vector.load %arg5[%c0_9, %c0_10] : memref<16x128xf32, #tpu.memory_space<vmem>>, vector<16x128xf32>
    tpu.vector_store %arg5[%c0_9, %c0_10], %15 {strides = array<i32>} : memref<16x128xf32, #tpu.memory_space<vmem>>, vector<16x128xf32>,
    return
  }
  func.func @transform_0(%arg0: i32) -> (i32, i32) {
    %c0_i32 = arith.constant 0 : i32
    %c0_i32_0 = arith.constant 0 : i32
    return %arg0, %c0_i32 : i32, i32
  }
  func.func @transform_1(%arg0: i32) -> (i32, i32) {
    %c0_i32 = arith.constant 0 : i32
    %c0_i32_0 = arith.constant 0 : i32
    %c0_i32_1 = arith.constant 0 : i32
    return %c0_i32, %c0_i32_0 : i32, i32
  }
  func.func @transform_2(%arg0: i32) -> (i32, i32) {
    %c0_i32 = arith.constant 0 : i32
    %c0_i32_0 = arith.constant 0 : i32
    %c0_i32_1 = arith.constant 0 : i32
    return %c0_i32, %c0_i32_0 : i32, i32
  }
  func.func @transform_3(%arg0: i32) -> (i32, i32) {
    %c0_i32 = arith.constant 0 : i32
    %c0_i32_0 = arith.constant 0 : i32
    %c0_i32_1 = arith.constant 0 : i32
    return %c0_i32, %c0_i32_0 : i32, i32
  }
  func.func @transform_4(%arg0: i32) -> (i32, i32) {
    %c0_i32 = arith.constant 0 : i32
    %c0_i32_0 = arith.constant 0 : i32
    return %arg0, %c0_i32 : i32, i32
  }
}

</mosaic_0001>

<llo_original>
// kernel: tpu_custom_call.1
$region0: #{tpu_custom_call.1}
  #allocation0 [shape = 'u32[]', space=smem, size = 0x4, offset = 0x4, fixed_abs, tag = 'smem constant byte address 0x4 - core index']
  #allocation1 [shape = 'u32[72,128]{1,0:T(1,128)}', space=vmem, size = 0x9000, scoped, tag = 'internal scratch']
  %s0 = inlined_call_operand.hbm [shape: f32[16,128], index: 0, kind: input, shape index: {}]
  %s1 = inlined_call_operand.hbm [shape: f32[1,128], index: 1, kind: input, shape index: {}]
  %s2 = inlined_call_operand.vmem [shape: f32[1,128], index: 2, kind: input, shape index: {}]
  %s3 = inlined_call_operand.hbm [shape: f32[128,128], index: 3, kind: input, shape index: {}]
  %s4 = inlined_call_operand.hbm [shape: f32[16,128], index: 4, kind: output, shape index: {}]
  %s5 = sld [smem:[#allocation0]]
  $region38: #{tpu_custom_call.1} parent=0
    _
  %s7 = ssub.s32 1, %s5
  %s8 = scalar_select 0, %s7, %s5
  $region1: #{tpu_custom_call.1} parent=0
    #allocation2 [shape = 'u8[8192]{0}', space=vmem, size = 0x2000, scoped, tag = 'input window, operand 0, single buffered']
    #allocation3 [shape = 's32[1]{0}', space=sflag, size = 0x4, scoped, tag = 'scoped memory for tpu_custom_call.1']
    #allocation4 [shape = 's32[1]{0}', space=sflag, size = 0x4, scoped, tag = 'scoped memory for tpu_custom_call.1']
    #allocation5 [shape = 'u8[512]{0}', space=vmem, size = 0x400, scoped, tag = 'input window, operand 1, single buffered']
    #allocation6 [shape = 's32[1]{0}', space=sflag, size = 0x4, scoped, tag = 'scoped memory for tpu_custom_call.1']
    #allocation7 [shape = 'u8[65536]{0}', space=vmem, size = 0x10000, scoped, tag = 'input window, operand 3, single buffered']
    #allocation8 [shape = 'u8[8192]{0}', space=vmem, size = 0x2000, scoped, tag = 'output window, operand 0, single buffered']
    %9 = vsyncpa [#allocation3], 0
    %10 = vsyncpa [#allocation6], 0
    %11 = vsyncpa [#allocation4], 0
    // Predicated region
    $region2: #{tpu_custom_call.1} parent=1 // pred_check
      _
    $region3: #{tpu_custom_call.1} parent=1 // pred_check_branch
      %13 = sbr.rel (0) target = $region5
    $region4: #{tpu_custom_call.1} parent=1 // pred_region
      %15 = vsyncadd [#allocation3], 0
      %s16 = sshll.u32 %s0, 4
      %s17 = int_to_ptr.hbm [resolvable:$true] %s16
      %s18 = sshll.u32 [#allocation2], 4
      %s19 = int_to_ptr.vmem [resolvable:$true] %s18
      %24 = dma.hbm_to_vmem [thread:$0]  %s17, 256, %s19, [#allocation3], 128, 128, 8
    $region5: #{tpu_custom_call.1} parent=1 // pred_fallthru
      _
    // Predicated region
    $region6: #{tpu_custom_call.1} parent=1 // pred_check
      _
    $region7: #{tpu_custom_call.1} parent=1 // pred_check_branch
      %26 = sbr.rel (0) target = $region9
    $region8: #{tpu_custom_call.1} parent=1 // pred_region
      %28 = vsyncadd [#allocation6], 0
      %s30 = sshll.u32 %s1, 4
      %s31 = int_to_ptr.hbm [resolvable:$true] %s30
      %s32 = sshll.u32 [#allocation5], 4
      %s33 = int_to_ptr.vmem [resolvable:$true] %s32
      %35 = dma.hbm_to_vmem [thread:$0]  %s31, 16, %s33, [#allocation6]
    $region9: #{tpu_custom_call.1} parent=1 // pred_fallthru
      _
    // Predicated region
    $region10: #{tpu_custom_call.1} parent=1 // pred_check
      _
    $region11: #{tpu_custom_call.1} parent=1 // pred_check_branch
      %37 = sbr.rel (0) target = $region13
    $region12: #{tpu_custom_call.1} parent=1 // pred_region
      _
    $region13: #{tpu_custom_call.1} parent=1 // pred_fallthru
      _
    // Predicated region
    $region14: #{tpu_custom_call.1} parent=1 // pred_check
      _
    $region15: #{tpu_custom_call.1} parent=1 // pred_check_branch
      %39 = sbr.rel (0) target = $region17
    $region16: #{tpu_custom_call.1} parent=1 // pred_region
      %41 = vsyncadd [#allocation6], 0
      %s42 = sshll.u32 %s3, 4
      %s43 = int_to_ptr.hbm [resolvable:$true] %s42
      %s44 = sshll.u32 [#allocation7], 4
      %s45 = int_to_ptr.vmem [resolvable:$true] %s44
      %50 = dma.hbm_to_vmem [thread:$0]  %s43, 2048, %s45, [#allocation6], 128, 128, 8
    $region17: #{tpu_custom_call.1} parent=1 // pred_fallthru
      _
    // Predicated region
    $region18: #{tpu_custom_call.1} parent=1 // pred_check
      _
    $region19: #{tpu_custom_call.1} parent=1 // pred_check_branch
      %52 = sbr.rel (0) target = $region21
    $region20: #{tpu_custom_call.1} parent=1 // pred_region
      %54 = dma.done [#allocation3], 256
    $region21: #{tpu_custom_call.1} parent=1 // pred_fallthru
      _
    // Predicated region
    $region22: #{tpu_custom_call.1} parent=1 // pred_check
      _
    $region23: #{tpu_custom_call.1} parent=1 // pred_check_branch
      %56 = sbr.rel (0) target = $region25
    $region24: #{tpu_custom_call.1} parent=1 // pred_region
      %58 = dma.done [#allocation6], 16
    $region25: #{tpu_custom_call.1} parent=1 // pred_fallthru
      _
    // Predicated region
    $region26: #{tpu_custom_call.1} parent=1 // pred_check
      _
    $region27: #{tpu_custom_call.1} parent=1 // pred_check_branch
      %60 = sbr.rel (0) target = $region29
    $region28: #{tpu_custom_call.1} parent=1 // pred_region
      %62 = dma.done [#allocation6], 2048
    $region29: #{tpu_custom_call.1} parent=1 // pred_fallthru
      _
    %v63 = vld [vmem:[#allocation2] sm:$0xff]
    %v64 = vld [vmem:[#allocation2 + $0x8] sm:$0xff]
    %v65 = vld [vmem:[#allocation7] sm:$0xff]
    %v66 = vld [vmem:[#allocation7 + $0x8] sm:$0xff]
    %v67 = vld [vmem:[#allocation7 + $0x10] sm:$0xff]
    %v68 = vld [vmem:[#allocation7 + $0x18] sm:$0xff]
    %v69 = vld [vmem:[#allocation7 + $0x20] sm:$0xff]
    %v70 = vld [vmem:[#allocation7 + $0x28] sm:$0xff]
    %v71 = vld [vmem:[#allocation7 + $0x30] sm:$0xff]
    %v72 = vld [vmem:[#allocation7 + $0x38] sm:$0xff]
    %v73 = vld [vmem:[#allocation7 + $0x40] sm:$0xff]
    %v74 = vld [vmem:[#allocation7 + $0x48] sm:$0xff]
    %v75 = vld [vmem:[#allocation7 + $0x50] sm:$0xff]
    %v76 = vld [vmem:[#allocation7 + $0x58] sm:$0xff]
    %v77 = vld [vmem:[#allocation7 + $0x60] sm:$0xff]
    %v78 = vld [vmem:[#allocation7 + $0x68] sm:$0xff]
    %v79 = vld [vmem:[#allocation7 + $0x70] sm:$0xff]
    %v80 = vld [vmem:[#allocation7 + $0x78] sm:$0xff]
    %81 = vmatpush.msra.mxu0 %v80
    %82 = vmatpush.msra.mxu0 %v79
    %83 = vmatpush.msra.mxu0 %v78
    %84 = vmatpush.msra.mxu0 %v77
    %85 = vmatpush.msra.mxu0 %v76
    %86 = vmatpush.msra.mxu0 %v75
    %87 = vmatpush.msra.mxu0 %v74
    %88 = vmatpush.msra.mxu0 %v73
    %89 = vmatpush.msra.mxu0 %v72
    %90 = vmatpush.msra.mxu0 %v71
    %91 = vmatpush.msra.mxu0 %v70
    %92 = vmatpush.msra.mxu0 %v69
    %93 = vmatpush.msra.mxu0 %v68
    %94 = vmatpush.msra.mxu0 %v67
    %95 = vmatpush.msra.mxu0 %v66
    %96 = vmatpush.msra.mxu0 %v65
    %97 = vmatmul.f32.gmra.mxu0 %v63
    %v98 = vpop.f32.mrf.mxu0
    %v99 = vadd.f32 0.0, %v98
    %100 = vmatmul.f32.gmra.mxu0 %v64
    %v101 = vpop.f32.mrf.mxu0
    %v102 = vadd.f32 0.0, %v101
    %103 = vdwg.mxu0
    %v104 = vsub.f32 %v63, %v99
    %v105 = vsub.f32 %v64, %v102
    %v106 = vmul.f32 %v104, %v104
    %v107 = vmul.f32 %v105, %v105
    %108 = vmatpush.msra.mxu0 %v80
    %109 = vmatpush.msra.mxu0 %v79
    %110 = vmatpush.msra.mxu0 %v78
    %111 = vmatpush.msra.mxu0 %v77
    %112 = vmatpush.msra.mxu0 %v76
    %113 = vmatpush.msra.mxu0 %v75
    %114 = vmatpush.msra.mxu0 %v74
    %115 = vmatpush.msra.mxu0 %v73
    %116 = vmatpush.msra.mxu0 %v72
    %117 = vmatpush.msra.mxu0 %v71
    %118 = vmatpush.msra.mxu0 %v70
    %119 = vmatpush.msra.mxu0 %v69
    %120 = vmatpush.msra.mxu0 %v68
    %121 = vmatpush.msra.mxu0 %v67
    %122 = vmatpush.msra.mxu0 %v66
    %123 = vmatpush.msra.mxu0 %v65
    %124 = vmatmul.f32.gmra.mxu0 %v106
    %v125 = vpop.f32.mrf.mxu0
    %v126 = vadd.f32 1e-05, %v125
    %127 = vmatmul.f32.gmra.mxu0 %v107
    %v128 = vpop.f32.mrf.mxu0
    %v129 = vadd.f32 1e-05, %v128
    %130 = vdwg.mxu0
    %v131 = vrsqrt.pop %v126
    %v132 = vmul.f32 %v131, %v126
    %v133 = vmul.f32 %v132, %v131
    %v134 = vmul.f32 0.5, %v133
    %v135 = vsub.f32 1.5, %v134
    %v136 = vmul.f32 %v131, %v135
    %vm137 = vweird.f32 %v126
    %vm138 = vweird.f32 %v131
    %vm139 = vmor %vm137, %vm138
    %v140 = vsel %vm139, %v131, %v136
    %v141 = vrsqrt.pop %v129
    %v142 = vmul.f32 %v141, %v129
    %v143 = vmul.f32 %v142, %v141
    %v144 = vmul.f32 0.5, %v143
    %v145 = vsub.f32 1.5, %v144
    %v146 = vmul.f32 %v141, %v145
    %vm147 = vweird.f32 %v129
    %vm148 = vweird.f32 %v141
    %vm149 = vmor %vm147, %vm148
    %v150 = vsel %vm149, %v141, %v146
    %v151 = vmul.f32 %v104, %v140
    %v152 = vmul.f32 %v105, %v150
    %v153 = vld [vmem:[#allocation5] sm:$0x1]
    %v155 = vperm.slane %v153, 0
    %v157 = vmul.f32 %v151, %v155
    %v158 = vmul.f32 %v152, %v155
    %v159 = vld [vmem:[%s2] sm:$0x1]
    %v161 = vperm.slane %v159, 0
    %v163 = vadd.f32 %v157, %v161
    %v164 = vadd.f32 %v158, %v161
    %165 = vst [vmem:[#allocation8] sm:$0xff] %v163
    %166 = vst [vmem:[#allocation8 + $0x8] sm:$0xff] %v164
    // Predicated region
    $region30: #{tpu_custom_call.1} parent=1 // pred_check
      _
    $region31: #{tpu_custom_call.1} parent=1 // pred_check_branch
      %168 = sbr.rel (0) target = $region33
    $region32: #{tpu_custom_call.1} parent=1 // pred_region
      %170 = vsyncadd [#allocation4], 0
      %s171 = sshll.u32 [#allocation8], 4
      %s172 = int_to_ptr.vmem [resolvable:$true] %s171
      %s173 = sshll.u32 %s4, 4
      %s174 = int_to_ptr.hbm [resolvable:$true] %s173
      %179 = dma.vmem_to_hbm [thread:$0]  %s172, 256, %s174, [#allocation4], 128, 128, 8
    $region33: #{tpu_custom_call.1} parent=1 // pred_fallthru
      _
    // Predicated region
    $region34: #{tpu_custom_call.1} parent=1 // pred_check
      _
    $region35: #{tpu_custom_call.1} parent=1 // pred_check_branch
      %181 = sbr.rel (0) target = $region37
    $region36: #{tpu_custom_call.1} parent=1 // pred_region
      %183 = dma.done [#allocation4], 256
    $region37: #{tpu_custom_call.1} parent=1 // pred_fallthru
      _
    %184 = vsyncpa [#allocation3], 1
    %185 = vsyncpa [#allocation6], 1
    %186 = vsyncpa [#allocation4], 1

</llo_original>
